<compile_context>
chip_gen: v6e
topology: v6e:2x2x1
jax: 0.10.0
libtpu: 0.0.40
codegen_flags: <defaults>
</compile_context>

<pallas_src>
import jax
import jax.numpy as jnp
from jax.experimental import pallas as pl
from jax.experimental.pallas import tpu as pltpu


def _round_up(n, m):
    return (n + m - 1) // m * m


def _disc_kernel(x_ref, cb_ref, w1_ref, w2_ref, b2_ref, out_ref):
    # fc1 on the MXU: bf16 operands, f32 accumulation.
    h = jnp.dot(x_ref[...], w1_ref[...], preferred_element_type=jnp.float32)
    # Add the folded (embedding + b1) bias tile and ReLU, all in f32 (VPU).
    h = jnp.maximum(h + cb_ref[...], 0.0)
    # fc2 (H -> 1) as a lane reduction instead of an N=1 MXU matmul.
    o = jnp.sum(h * w2_ref[...], axis=-1, keepdims=True) + b2_ref[0]
    # Numerically-stable sigmoid: exp + approximate reciprocal (EUP path).
    e = jnp.exp(-jnp.abs(o))
    s = jnp.where(o >= 0.0, 1.0, e) * pl.reciprocal(1.0 + e, approx=True)
    # Lane-dense store: broadcast the [TB, 1] column across 128 lanes.
    out_ref[...] = jnp.broadcast_to(s, out_ref.shape).astype(out_ref.dtype)


def discriminator_forward(x, labels, params):
    """x: [B, x_dim] float32, labels: [B] int32 -> [B, 1] float32."""
    w1_x, w1_c = params["w1_x"], params["w1_c"]
    b1, w2, b2, emb = params["b1"], params["w2"], params["b2"], params["emb"]

    B, x_dim = x.shape
    d_pad, h_pad = w1_x.shape

    # Label path folded into a per-class bias table ([num_classes, H_pad]):
    # tiny matmul + gather, left as plain-JAX glue.
    table = emb @ w1_c + b1               # [num_classes, H_pad]
    cbias = table[labels]                 # [B, H_pad], f32

    # Batch tiling: TB up to 128, padded so the grid divides evenly.
    tb = min(128, _round_up(B, 8))
    b_pad = _round_up(B, tb)
    if b_pad != B:
        x = jnp.pad(x, ((0, b_pad - B), (0, 0)))
        cbias = jnp.pad(cbias, ((0, b_pad - B), (0, 0)))
    if d_pad != x_dim:
        x = jnp.pad(x, ((0, 0), (0, d_pad - x_dim)))

    # bf16 MXU operands (f32 accumulation inside the kernel).
    x_bf = x.astype(jnp.bfloat16)
    w1_bf = w1_x.astype(jnp.bfloat16)

    lane_out = 128
    grid = (b_pad // tb,)

    out = pl.pallas_call(
        _disc_kernel,
        out_shape=jax.ShapeDtypeStruct((b_pad, lane_out), jnp.float32),
        grid=grid,
        in_specs=[
            pl.BlockSpec((tb, d_pad), lambda i: (i, 0)),      # x tile (bf16)
            pl.BlockSpec((tb, h_pad), lambda i: (i, 0)),      # folded bias tile
            pl.BlockSpec((d_pad, h_pad), lambda i: (0, 0)),   # w1 (resident)
            pl.BlockSpec((1, h_pad), lambda i: (0, 0)),       # w2 row (resident)
            pl.BlockSpec(memory_space=pltpu.MemorySpace.SMEM),  # b2 scalar
        ],
        out_specs=pl.BlockSpec((tb, lane_out), lambda i: (i, 0)),
        compiler_params=pltpu.CompilerParams(
            dimension_semantics=("parallel",)),
    )(x_bf, cbias, w1_bf, w2, b2)

    # Lane-dense slab -> [B, 1]
    return out[:B, :1]


def init_params(key, x_dim, h_dim, num_classes):
    k_emb, k_w1, k_w2 = jax.random.split(key, 3)

    # xavier_normal on the full fc1 weight (fan_in = x_dim + num_classes).
    fan_in1 = x_dim + num_classes
    std1 = jnp.sqrt(2.0 / (fan_in1 + h_dim))
    w1 = std1 * jax.random.normal(k_w1, (fan_in1, h_dim), dtype=jnp.float32)
    std2 = jnp.sqrt(2.0 / (h_dim + 1))
    w2 = std2 * jax.random.normal(k_w2, (h_dim, 1), dtype=jnp.float32)
    # nn.Embedding default init: N(0, 1)
    emb = jax.random.normal(k_emb, (num_classes, num_classes), dtype=jnp.float32)

    # Pad D (x part only) and H to multiples of 128 once, here.
    d_pad = _round_up(x_dim, 128)
    h_pad = _round_up(h_dim, 128)
    w1_x = jnp.zeros((d_pad, h_pad), jnp.float32).at[:x_dim, :h_dim].set(w1[:x_dim])
    w1_c = jnp.zeros((num_classes, h_pad), jnp.float32).at[:, :h_dim].set(w1[x_dim:])
    b1 = jnp.zeros((1, h_pad), jnp.float32)
    w2_row = jnp.zeros((1, h_pad), jnp.float32).at[0, :h_dim].set(w2[:, 0])
    b2 = jnp.zeros((1,), jnp.float32)

    return {"emb": emb, "w1_x": w1_x, "w1_c": w1_c, "b1": b1,
            "w2": w2_row, "b2": b2}


if __name__ == "__main__":
    x_dim, h_dim, num_classes = 64, 128, 10
    batch = 256   # exercises batch tiling: TB=128, grid=(2,)

    key = jax.random.PRNGKey(0)
    k_params, k_x, k_lbl = jax.random.split(key, 3)

    params = init_params(k_params, x_dim, h_dim, num_classes)
    x = jax.random.normal(k_x, (batch, x_dim), dtype=jnp.float32)
    labels = jax.random.randint(k_lbl, (batch,), 0, num_classes, dtype=jnp.int32)

    out = discriminator_forward(x, labels, params)
    out = jax.block_until_ready(out)

    # Pure-JAX f32 reference with the original (unpadded, concat) semantics.
    w1_full = jnp.concatenate(
        [params["w1_x"][:x_dim, :h_dim], params["w1_c"][:, :h_dim]], axis=0)
    b1_ref = params["b1"][:, :h_dim]
    w2_ref = params["w2"][:1, :h_dim].T          # [h_dim, 1]
    b2_ref = params["b2"]
    c = params["emb"][labels]
    xc = jnp.concatenate([x, c], axis=1)
    h = jnp.maximum(xc @ w1_full + b1_ref, 0.0)
    ref = jax.nn.sigmoid(h @ w2_ref + b2_ref)

    assert out.shape == (batch, 1)
    # bf16 MXU operands -> allow a small absolute tolerance on the sigmoid.
    assert jnp.allclose(out, ref, atol=2e-2, rtol=0.0), float(
        jnp.max(jnp.abs(out - ref)))

    print("KERNEL_OK")
</pallas_src>

<mosaic_0001>
module attributes {stable_mosaic.version = 11 : i64} {
  func.func @_disc_kernel(%arg0: i32, %arg1: memref<128x128xbf16, #tpu.memory_space<vmem>>, %arg2: memref<128x128xf32, #tpu.memory_space<vmem>>, %arg3: memref<128x128xbf16, #tpu.memory_space<vmem>>, %arg4: memref<1x128xf32, #tpu.memory_space<vmem>>, %arg5: memref<1xf32, #tpu.memory_space<smem>>, %arg6: memref<128x128xf32, #tpu.memory_space<vmem>>) attributes {dimension_semantics = [#tpu.dimension_semantics<parallel>], iteration_bounds = array<i64: 2>, scalar_prefetch = 0 : i64, scratch_operands = 0 : i64, tpu.core_type = #tpu.core_type<tc>, window_params = [{transform_indices = @transform_0, window_bounds = array<i64: 128, 128>}, {transform_indices = @transform_1, window_bounds = array<i64: 128, 128>}, {pipeline_mode = #tpu.pipeline_mode<synchronous>, transform_indices = @transform_2, window_bounds = array<i64: 128, 128>}, {pipeline_mode = #tpu.pipeline_mode<synchronous>, transform_indices = @transform_3, window_bounds = array<i64: 1, 128>}, {transform_indices = @transform_4, window_bounds = array<i64: 1>}, {transform_indices = @transform_5, window_bounds = array<i64: 128, 128>}]} {
    %c0 = arith.constant 0 : index
    %c0_0 = arith.constant 0 : index
    %0 = vector.load %arg1[%c0, %c0_0] : memref<128x128xbf16, #tpu.memory_space<vmem>>, vector<128x128xbf16>
    %c0_1 = arith.constant 0 : index
    %c0_2 = arith.constant 0 : index
    %1 = vector.load %arg3[%c0_1, %c0_2] : memref<128x128xbf16, #tpu.memory_space<vmem>>, vector<128x128xbf16>
    %cst = arith.constant dense<0.000000e+00> : vector<128x128xf32>
    %2 = tpu.matmul %0, %1, %cst {dimension_numbers = #tpu.dot_dimension_numbers<[1], [0], [0], [1], [0, 0, 1, 1], [], []>} : vector<128x128xbf16>, vector<128x128xbf16>, vector<128x128xf32> -> vector<128x128xf32>
    %c0_3 = arith.constant 0 : index
    %c0_4 = arith.constant 0 : index
    %3 = vector.load %arg2[%c0_3, %c0_4] : memref<128x128xf32, #tpu.memory_space<vmem>>, vector<128x128xf32>
    %4 = arith.addf %2, %3 : vector<128x128xf32>
    %cst_5 = arith.constant 0.000000e+00 : f32
    %5 = vector.broadcast %cst_5 : f32 to vector<128x128xf32>
    %6 = arith.maximumf %4, %5 : vector<128x128xf32>
    %c0_6 = arith.constant 0 : index
    %c0_7 = arith.constant 0 : index
    %7 = vector.load %arg4[%c0_6, %c0_7] : memref<1x128xf32, #tpu.memory_space<vmem>>, vector<1x128xf32>
    %8 = vector.broadcast %7 : vector<1x128xf32> to vector<128x128xf32>
    %9 = arith.mulf %6, %8 : vector<128x128xf32>
    %cst_8 = arith.constant dense<0.000000e+00> : vector<128xf32>
    %10 = vector.multi_reduction <add>, %9, %cst_8 [1] : vector<128x128xf32> to vector<128xf32>
    %11 = vector.shape_cast %10 : vector<128xf32> to vector<128x1xf32>
    %c0_9 = arith.constant 0 : index
    %12 = memref.load %arg5[%c0_9] : memref<1xf32, #tpu.memory_space<smem>>
    %13 = vector.broadcast %12 : f32 to vector<128x1xf32>
    %14 = arith.addf %11, %13 : vector<128x1xf32>
    %15 = math.absf %14 : vector<128x1xf32>
    %cst_10 = arith.constant 0.000000e+00 : f32
    %16 = vector.broadcast %cst_10 : f32 to vector<128x1xf32>
    %17 = arith.subf %16, %15 : vector<128x1xf32>
    %18 = math.exp %17 : vector<128x1xf32>
    %cst_11 = arith.constant 0.000000e+00 : f32
    %19 = vector.broadcast %cst_11 : f32 to vector<128x1xf32>
    %20 = arith.cmpf oge, %14, %19 : vector<128x1xf32>
    %cst_12 = arith.constant 1.000000e+00 : f32
    %21 = vector.broadcast %cst_12 : f32 to vector<128x1xf32>
    %22 = arith.select %20, %21, %18 : vector<128x1xi1>, vector<128x1xf32>
    %cst_13 = arith.constant 1.000000e+00 : f32
    %23 = vector.broadcast %cst_13 : f32 to vector<128x1xf32>
    %24 = arith.addf %23, %18 : vector<128x1xf32>
    %25 = tpu.reciprocal %24 {approx = true} : vector<128x1xf32> -> vector<128x1xf32>
    %26 = arith.mulf %22, %25 : vector<128x1xf32>
    %27 = vector.shape_cast %26 : vector<128x1xf32> to vector<128x1xf32>
    %28 = vector.broadcast %27 : vector<128x1xf32> to vector<128x128xf32>
    %c0_14 = arith.constant 0 : index
    %c0_15 = arith.constant 0 : index
    %29 = vector.load %arg6[%c0_14, %c0_15] : memref<128x128xf32, #tpu.memory_space<vmem>>, vector<128x128xf32>
    tpu.vector_store %arg6[%c0_14, %c0_15], %28 {strides = array<i32>} : memref<128x128xf32, #tpu.memory_space<vmem>>, vector<128x128xf32>,
    return
  }
  func.func @transform_0(%arg0: i32) -> (i32, i32) {
    %c0_i32 = arith.constant 0 : i32
    %c0_i32_0 = arith.constant 0 : i32
    return %arg0, %c0_i32 : i32, i32
  }
  func.func @transform_1(%arg0: i32) -> (i32, i32) {
    %c0_i32 = arith.constant 0 : i32
    %c0_i32_0 = arith.constant 0 : i32
    return %arg0, %c0_i32 : i32, i32
  }
  func.func @transform_2(%arg0: i32) -> (i32, i32) {
    %c0_i32 = arith.constant 0 : i32
    %c0_i32_0 = arith.constant 0 : i32
    %c0_i32_1 = arith.constant 0 : i32
    return %c0_i32, %c0_i32_0 : i32, i32
  }
  func.func @transform_3(%arg0: i32) -> (i32, i32) {
    %c0_i32 = arith.constant 0 : i32
    %c0_i32_0 = arith.constant 0 : i32
    %c0_i32_1 = arith.constant 0 : i32
    return %c0_i32, %c0_i32_0 : i32, i32
  }
  func.func @transform_4(%arg0: i32) -> i32 {
    %c0_i32 = arith.constant 0 : i32
    %c0_i32_0 = arith.constant 0 : i32
    return %c0_i32 : i32
  }
  func.func @transform_5(%arg0: i32) -> (i32, i32) {
    %c0_i32 = arith.constant 0 : i32
    %c0_i32_0 = arith.constant 0 : i32
    return %arg0, %c0_i32 : i32, i32
  }
}

</mosaic_0001>

<llo_original>
// kernel: tpu_custom_call.1
$region0: #{tpu_custom_call.1}
  #allocation0 [shape = 'u32[]', space=smem, size = 0x4, offset = 0x4, fixed_abs, tag = 'smem constant byte address 0x4 - core index']
  #allocation1 [shape = 'u32[144,128]{1,0:T(1,128)}', space=vmem, size = 0x12000, scoped, tag = 'internal scratch']
  #allocation2 [shape = 'f32[1]{0:T(128)S(6)}', space=smem, size = 0x200, scoped, tag = 'scoped memory for tpu_custom_call.1']
  %s0 = inlined_call_operand.hbm [shape: bf16[256,128], index: 0, kind: input, shape index: {}]
  %s1 = inlined_call_operand.hbm [shape: f32[256,128], index: 1, kind: input, shape index: {}]
  %s2 = inlined_call_operand.hbm [shape: bf16[128,128], index: 2, kind: input, shape index: {}]
  %s3 = inlined_call_operand.vmem [shape: f32[1,128], index: 3, kind: input, shape index: {}]
  %s4 = inlined_call_operand.<no memory space> [shape: f32[1], index: 4, kind: input, shape index: {}]
  %s5 = inlined_call_operand.hbm [shape: f32[256,128], index: 5, kind: output, shape index: {}]
  %s6 = sld [smem:[#allocation0]]
  $region65: #{tpu_custom_call.1} parent=0
    _
  %s8 = ssub.s32 1, %s6
  %s9 = scalar_select 0, %s8, %s6
  %10 = sst [smem:[#allocation2]] %s4
  $region1: #{tpu_custom_call.1} parent=0
    #allocation3 [shape = 'u8[65536]{0}', space=vmem, size = 0x10000, scoped, tag = 'input window, operand 0']
    #allocation4 [shape = 's32[2]{0}', space=sflag, size = 0x8, scoped, tag = 'scoped memory for tpu_custom_call.1']
    #allocation5 [shape = 's32[2]{0}', space=sflag, size = 0x8, scoped, tag = 'scoped memory for tpu_custom_call.1']
    #allocation6 [shape = 'u8[131072]{0}', space=vmem, size = 0x20000, scoped, tag = 'input window, operand 1']
    #allocation7 [shape = 's32[2]{0}', space=sflag, size = 0x8, scoped, tag = 'scoped memory for tpu_custom_call.1']
    #allocation8 [shape = 'u8[32768]{0}', space=vmem, size = 0x8000, scoped, tag = 'input window, operand 2, single buffered']
    #allocation9 [shape = 'u8[131072]{0}', space=vmem, size = 0x20000, scoped, tag = 'output window, operand 0']
    %11 = vsyncpa [#allocation4], 0
    %s12 = scalar_lea.sflag [#allocation4], 1
    %13 = vsyncpa %s12, 0
    %14 = vsyncpa [#allocation7], 0
    %s15 = scalar_lea.sflag [#allocation7], 1
    %16 = vsyncpa %s15, 0
    %17 = vsyncpa [#allocation5], 0
    %s18 = scalar_lea.sflag [#allocation5], 1
    %19 = vsyncpa %s18, 0
    loop: start=0, step=1, limit=4
    $region2: #{tpu_custom_call.1} parent=1 // loop_pre_header
      _
    $region3: #{tpu_custom_call.1} parent=1 // loop_header
      %s21 = sphi 0, %s25
      %p22 = scmp.ge.s32.totalorder %s21, 4
      %s31 = sphi 0, %s33
      %s34 = sphi 0, %s31
      %s35 = sphi 0, %s34
      %s51 = sphi 0, %s35
      %s57 = sphi 0, %s59
      %s60 = sphi 0, %s57
      %s61 = sphi 0, %s60
      %s77 = sphi 0, %s61
      %s81 = sphi 0, %s81
      %s83 = sphi 0, %s81
      %s84 = sphi 0, %s83
      %s98 = sphi 0, %s84
      %s102 = sphi 0, %s102
      %s104 = sphi 0, %s102
      %s105 = sphi 0, %s104
      %s119 = sphi 0, %s105
      %s123 = sphi 0, %s123
      %s125 = sphi 0, %s123
      %s126 = sphi 0, %s125
      %s140 = sphi 0, %s126
      %s146 = sphi 0, %s148
      %s149 = sphi 0, %s146
      %s150 = sphi 0, %s149
      %s166 = sphi 0, %s150
    $region4: #{tpu_custom_call.1} parent=1 // loop_header_branch
      %24 = sbr.rel (%p22) target = $region8
    $region5: #{tpu_custom_call.1} parent=1 // loop_body
      %s26 = ssub.s32 %s21, 1
      %s27 = ssub.s32 %s21, 2
      %s28 = sadd.s32 %s21, 1
      %s29 = ssub.s32 %s21, %s28
      %p30 = scmp.eq.s32.totalorder %s29, 0
      %s32 = sadd.s32 %s31, 1
      %s33 = scalar_select %p30, %s31, %s32
      %p36 = pneg %p30
      %p37 = scmp.eq.s32.totalorder %s21, 1
      %p38 = por %p36, %p37
      %p39 = scmp.ne.s32.totalorder %s31, %s34
      %p40 = scmp.eq.s32.totalorder %s21, 0
      %p41 = por %p39, %p40
      %p42 = scmp.ne.s32.totalorder %s31, %s34
      %p43 = scmp.eq.s32.totalorder %s26, 1
      %p44 = por %p42, %p43
      %p45 = scmp.ne.s32.totalorder %s34, %s35
      %p46 = scmp.eq.s32.totalorder %s26, 0
      %p47 = por %p45, %p46
      %p48 = scmp.ne.s32.totalorder %s34, %s35
      %p49 = scmp.eq.s32.totalorder %s27, 1
      %p50 = por %p48, %p49
      %p52 = scmp.ne.s32.totalorder %s35, %s51
      %p53 = scmp.eq.s32.totalorder %s27, 0
      %p54 = por %p52, %p53
      %s55 = ssub.s32 %s21, %s28
      %p56 = scmp.eq.s32.totalorder %s55, 0
      %s58 = sadd.s32 %s57, 1
      %s59 = scalar_select %p56, %s57, %s58
      %p62 = pneg %p56
      %p63 = scmp.eq.s32.totalorder %s21, 1
      %p64 = por %p62, %p63
      %p65 = scmp.ne.s32.totalorder %s57, %s60
      %p66 = scmp.eq.s32.totalorder %s21, 0
      %p67 = por %p65, %p66
      %p68 = scmp.ne.s32.totalorder %s57, %s60
      %p69 = scmp.eq.s32.totalorder %s26, 1
      %p70 = por %p68, %p69
      %p71 = scmp.ne.s32.totalorder %s60, %s61
      %p72 = scmp.eq.s32.totalorder %s26, 0
      %p73 = por %p71, %p72
      %p74 = scmp.ne.s32.totalorder %s60, %s61
      %p75 = scmp.eq.s32.totalorder %s27, 1
      %p76 = por %p74, %p75
      %p78 = scmp.ne.s32.totalorder %s61, %s77
      %p79 = scmp.eq.s32.totalorder %s27, 0
      %p80 = por %p78, %p79
      %s82 = sadd.s32 %s81, 1
      %p85 = scmp.eq.s32.totalorder %s21, 1
      %p86 = scmp.ne.s32.totalorder %s81, %s83
      %p87 = scmp.eq.s32.totalorder %s21, 0
      %p88 = por %p86, %p87
      %p89 = scmp.ne.s32.totalorder %s81, %s83
      %p90 = scmp.eq.s32.totalorder %s26, 1
      %p91 = por %p89, %p90
      %p92 = scmp.ne.s32.totalorder %s83, %s84
      %p93 = scmp.eq.s32.totalorder %s26, 0
      %p94 = por %p92, %p93
      %p95 = scmp.ne.s32.totalorder %s83, %s84
      %p96 = scmp.eq.s32.totalorder %s27, 1
      %p97 = por %p95, %p96
      %p99 = scmp.ne.s32.totalorder %s84, %s98
      %p100 = scmp.eq.s32.totalorder %s27, 0
      %p101 = por %p99, %p100
      %s103 = sadd.s32 %s102, 1
      %p106 = scmp.eq.s32.totalorder %s21, 1
      %p107 = scmp.ne.s32.totalorder %s102, %s104
      %p108 = scmp.eq.s32.totalorder %s21, 0
      %p109 = por %p107, %p108
      %p110 = scmp.ne.s32.totalorder %s102, %s104
      %p111 = scmp.eq.s32.totalorder %s26, 1
      %p112 = por %p110, %p111
      %p113 = scmp.ne.s32.totalorder %s104, %s105
      %p114 = scmp.eq.s32.totalorder %s26, 0
      %p115 = por %p113, %p114
      %p116 = scmp.ne.s32.totalorder %s104, %s105
      %p117 = scmp.eq.s32.totalorder %s27, 1
      %p118 = por %p116, %p117
      %p120 = scmp.ne.s32.totalorder %s105, %s119
      %p121 = scmp.eq.s32.totalorder %s27, 0
      %p122 = por %p120, %p121
      %s124 = sadd.s32 %s123, 1
      %p127 = scmp.eq.s32.totalorder %s21, 1
      %p128 = scmp.ne.s32.totalorder %s123, %s125
      %p129 = scmp.eq.s32.totalorder %s21, 0
      %p130 = por %p128, %p129
      %p131 = scmp.ne.s32.totalorder %s123, %s125
      %p132 = scmp.eq.s32.totalorder %s26, 1
      %p133 = por %p131, %p132
      %p134 = scmp.ne.s32.totalorder %s125, %s126
      %p135 = scmp.eq.s32.totalorder %s26, 0
      %p136 = por %p134, %p135
      %p137 = scmp.ne.s32.totalorder %s125, %s126
      %p138 = scmp.eq.s32.totalorder %s27, 1
      %p139 = por %p137, %p138
      %p141 = scmp.ne.s32.totalorder %s126, %s140
      %p142 = scmp.eq.s32.totalorder %s27, 0
      %p143 = por %p141, %p142
      %s144 = ssub.s32 %s21, %s28
      %p145 = scmp.eq.s32.totalorder %s144, 0
      %s147 = sadd.s32 %s146, 1
      %s148 = scalar_select %p145, %s146, %s147
      %p151 = pneg %p145
      %p152 = scmp.eq.s32.totalorder %s21, 1
      %p153 = por %p151, %p152
      %p154 = scmp.ne.s32.totalorder %s146, %s149
      %p155 = scmp.eq.s32.totalorder %s21, 0
      %p156 = por %p154, %p155
      %p157 = scmp.ne.s32.totalorder %s146, %s149
      %p158 = scmp.eq.s32.totalorder %s26, 1
      %p159 = por %p157, %p158
      %p160 = scmp.ne.s32.totalorder %s149, %s150
      %p161 = scmp.eq.s32.totalorder %s26, 0
      %p162 = por %p160, %p161
      %p163 = scmp.ne.s32.totalorder %s149, %s150
      %p164 = scmp.eq.s32.totalorder %s27, 1
      %p165 = por %p163, %p164
      %p167 = scmp.ne.s32.totalorder %s150, %s166
      %p168 = scmp.eq.s32.totalorder %s27, 0
      %p169 = por %p167, %p168
      %p170 = scmp.le.s32.totalorder 1, %s21
      %p171 = scmp.lt.s32.totalorder %s21, 3
      %p172 = pnand %p170, %p171
      %p173 = pneg %p172
      // Predicated region
      $region9: #{tpu_custom_call.1} parent=5 // pred_check
        _
      $region10: #{tpu_custom_call.1} parent=5 // pred_check_branch
        %175 = sbr.rel (%p172) target = $region12
      $region11: #{tpu_custom_call.1} parent=5 // pred_region
        %s176 = ssub.s32 %s21, 1
        // Predicated region
        $region13: #{tpu_custom_call.1} parent=11 // pred_check
          %p177 = pneg %p94
        $region14: #{tpu_custom_call.1} parent=11 // pred_check_branch
          %179 = sbr.rel (%p177) target = $region16
        $region15: #{tpu_custom_call.1} parent=11 // pred_region
          %s181 = ssub.s32 1024, 1024
          %182 = vsyncadd [#allocation7], %s181
          %s183 = sshll.u32 [#allocation8], 4
          %s184 = int_to_ptr.vmem [resolvable:$true] %s183
          %189 = dma.hbm_to_vmem [thread:$0]  %s2, 1024, %s184, [#allocation7], 64, 64, 4
        $region16: #{tpu_custom_call.1} parent=11 // pred_fallthru
          _
        // Predicated region
        $region17: #{tpu_custom_call.1} parent=11 // pred_check
          %p190 = pneg %p115
        $region18: #{tpu_custom_call.1} parent=11 // pred_check_branch
          %192 = sbr.rel (%p190) target = $region20
        $region19: #{tpu_custom_call.1} parent=11 // pred_region
          _
        $region20: #{tpu_custom_call.1} parent=11 // pred_fallthru
          _
        // Predicated region
        $region21: #{tpu_custom_call.1} parent=11 // pred_check
          %p193 = pneg %p136
        $region22: #{tpu_custom_call.1} parent=11 // pred_check_branch
          %195 = sbr.rel (%p193) target = $region24
        $region23: #{tpu_custom_call.1} parent=11 // pred_region
          _
        $region24: #{tpu_custom_call.1} parent=11 // pred_fallthru
          _
      $region12: #{tpu_custom_call.1} parent=5 // pred_fallthru
        _
      %p196 = scmp.lt.s32.totalorder %s21, 2
      // Predicated region
      $region25: #{tpu_custom_call.1} parent=5 // pred_check
        %p197 = pneg %p196
      $region26: #{tpu_custom_call.1} parent=5 // pred_check_branch
        %199 = sbr.rel (%p197) target = $region28
      $region27: #{tpu_custom_call.1} parent=5 // pred_region
        // Predicated region
        $region29: #{tpu_custom_call.1} parent=27 // pred_check
          %p200 = pneg %p41
        $region30: #{tpu_custom_call.1} parent=27 // pred_check_branch
          %202 = sbr.rel (%p200) target = $region32
        $region31: #{tpu_custom_call.1} parent=27 // pred_region
          %s203 = sand.u32 %s31, 1
          %s204 = scalar_lea.sflag [#allocation4], %s203
          %s205 = sand.u32 %s31, 1
          %s206 = smul.addr %s205, 64
          %s207 = scalar_lea.vmem [#allocation3], %s206
          %s208 = smul.u32 16, %s21
          %s210 = ssub.s32 1024, 1024
          %211 = vsyncadd %s204, %s210
          %s212 = smul.addr %s208, 64
          %s213 = scalar_lea.hbm %s0, %s212
          %s214 = sshll.u32 %s207, 4
          %s215 = int_to_ptr.vmem [resolvable:$true] %s214
          %220 = dma.hbm_to_vmem [thread:$0]  %s213, 1024, %s215, %s204, 64, 64, 4
        $region32: #{tpu_custom_call.1} parent=27 // pred_fallthru
          _
        // Predicated region
        $region33: #{tpu_custom_call.1} parent=27 // pred_check
          %p221 = pneg %p67
        $region34: #{tpu_custom_call.1} parent=27 // pred_check_branch
          %223 = sbr.rel (%p221) target = $region36
        $region35: #{tpu_custom_call.1} parent=27 // pred_region
          %s224 = sand.u32 %s21, 1
          %s225 = scalar_lea.sflag [#allocation7], %s224
          %s226 = sand.u32 %s57, 1
          %s227 = smul.addr %s226, 128
          %s228 = scalar_lea.vmem [#allocation6], %s227
          %s229 = smul.u32 16, %s21
          %s231 = ssub.s32 2048, 2048
          %232 = vsyncadd %s225, %s231
          %s233 = smul.addr %s229, 128
          %s234 = scalar_lea.hbm %s1, %s233
          %s235 = sshll.u32 %s228, 4
          %s236 = int_to_ptr.vmem [resolvable:$true] %s235
          %241 = dma.hbm_to_vmem [thread:$0]  %s234, 2048, %s236, %s225, 128, 128, 8
        $region36: #{tpu_custom_call.1} parent=27 // pred_fallthru
          _
      $region28: #{tpu_custom_call.1} parent=5 // pred_fallthru
        _
      %p242 = scmp.le.s32.totalorder 1, %s21
      %p243 = scmp.lt.s32.totalorder %s21, 3
      %p244 = pnand %p242, %p243
      %p245 = pneg %p244
      // Predicated region
      $region37: #{tpu_custom_call.1} parent=5 // pred_check
        _
      $region38: #{tpu_custom_call.1} parent=5 // pred_check_branch
        %247 = sbr.rel (%p244) target = $region40
      $region39: #{tpu_custom_call.1} parent=5 // pred_region
        %s248 = ssub.s32 %s21, 1
        %s249 = sand.u32 %s34, 1
        %s250 = scalar_lea.sflag [#allocation4], %s249
        %s251 = sand.u32 %s34, 1
        %s252 = smul.addr %s251, 64
        %s253 = scalar_lea.vmem [#allocation3], %s252
        // Predicated region
        $region41: #{tpu_custom_call.1} parent=39 // pred_check
          %p254 = pneg %p47
        $region42: #{tpu_custom_call.1} parent=39 // pred_check_branch
          %256 = sbr.rel (%p254) target = $region44
        $region43: #{tpu_custom_call.1} parent=39 // pred_region
          %257 = dma.done %s250, 1024
        $region44: #{tpu_custom_call.1} parent=39 // pred_fallthru
          _
        %s258 = sand.u32 %s26, 1
        %s259 = scalar_lea.sflag [#allocation7], %s258
        %s260 = sand.u32 %s60, 1
        %s261 = smul.addr %s260, 128
        %s262 = scalar_lea.vmem [#allocation6], %s261
        // Predicated region
        $region45: #{tpu_custom_call.1} parent=39 // pred_check
          %p263 = pneg %p73
        $region46: #{tpu_custom_call.1} parent=39 // pred_check_branch
          %265 = sbr.rel (%p263) target = $region48
        $region47: #{tpu_custom_call.1} parent=39 // pred_region
          %266 = dma.done %s259, 2048
        $region48: #{tpu_custom_call.1} parent=39 // pred_fallthru
          _
        // Predicated region
        $region49: #{tpu_custom_call.1} parent=39 // pred_check
          %p267 = pneg %p94
        $region50: #{tpu_custom_call.1} parent=39 // pred_check_branch
          %269 = sbr.rel (%p267) target = $region52
        $region51: #{tpu_custom_call.1} parent=39 // pred_region
          %270 = dma.done [#allocation7], 1024
        $region52: #{tpu_custom_call.1} parent=39 // pred_fallthru
          _
        %s271 = sand.u32 %s34, 1
        %s272 = scalar_lea.sflag [#allocation4], %s271
        %s273 = sand.u32 %s34, 1
        %s274 = smul.addr %s273, 64
        %s275 = scalar_lea.vmem [#allocation3], %s274
        %p276 = pneg %p47
        %p277 = pneg %p44
        %s278 = sand.u32 %s26, 1
        %s279 = scalar_lea.sflag [#allocation7], %s278
        %s280 = sand.u32 %s60, 1
        %s281 = smul.addr %s280, 128
        %s282 = scalar_lea.vmem [#allocation6], %s281
        %p283 = pneg %p73
        %p284 = pneg %p70
        %p285 = pneg %p94
        %p286 = pneg %p91
        %p287 = pneg %p115
        %p288 = pneg %p112
        %p289 = pneg %p136
        %p290 = pneg %p133
        %p291 = pneg %p162
        %p292 = pneg %p159
        %s293 = sand.u32 %s149, 1
        %s294 = scalar_lea.sflag [#allocation5], %s293
        %s295 = sand.u32 %s149, 1
        %s296 = smul.addr %s295, 128
        %s297 = scalar_lea.vmem [#allocation9], %s296
        %s298 = smul.u32 16, %s26
        %s299 = smul.u32 16, %s26
        %s300 = smul.u32 16, %s26
        %v302 = vld [vmem:[%s253] sm:$0xf]
        %v303 = vld [vmem:[%s253 + $0x4] sm:$0xf]
        %v304 = vld [vmem:[%s253 + $0x8] sm:$0xf]
        %v305 = vld [vmem:[%s253 + $0xc] sm:$0xf]
        %v306 = vld [vmem:[%s253 + $0x10] sm:$0xf]
        %v307 = vld [vmem:[%s253 + $0x14] sm:$0xf]
        %v308 = vld [vmem:[%s253 + $0x18] sm:$0xf]
        %v309 = vld [vmem:[%s253 + $0x1c] sm:$0xf]
        %v310 = vld [vmem:[%s253 + $0x20] sm:$0xf]
        %v311 = vld [vmem:[%s253 + $0x24] sm:$0xf]
        %v312 = vld [vmem:[%s253 + $0x28] sm:$0xf]
        %v313 = vld [vmem:[%s253 + $0x2c] sm:$0xf]
        %v314 = vld [vmem:[%s253 + $0x30] sm:$0xf]
        %v315 = vld [vmem:[%s253 + $0x34] sm:$0xf]
        %v316 = vld [vmem:[%s253 + $0x38] sm:$0xf]
        %v317 = vld [vmem:[%s253 + $0x3c] sm:$0xf]
        %v318 = vld [vmem:[#allocation8] sm:$0xf]
        %v319 = vld [vmem:[#allocation8 + $0x4] sm:$0xf]
        %v320 = vld [vmem:[#allocation8 + $0x8] sm:$0xf]
        %v321 = vld [vmem:[#allocation8 + $0xc] sm:$0xf]
        %v322 = vld [vmem:[#allocation8 + $0x10] sm:$0xf]
        %v323 = vld [vmem:[#allocation8 + $0x14] sm:$0xf]
        %v324 = vld [vmem:[#allocation8 + $0x18] sm:$0xf]
        %v325 = vld [vmem:[#allocation8 + $0x1c] sm:$0xf]
        %v326 = vld [vmem:[#allocation8 + $0x20] sm:$0xf]
        %v327 = vld [vmem:[#allocation8 + $0x24] sm:$0xf]
        %v328 = vld [vmem:[#allocation8 + $0x28] sm:$0xf]
        %v329 = vld [vmem:[#allocation8 + $0x2c] sm:$0xf]
        %v330 = vld [vmem:[#allocation8 + $0x30] sm:$0xf]
        %v331 = vld [vmem:[#allocation8 + $0x34] sm:$0xf]
        %v332 = vld [vmem:[#allocation8 + $0x38] sm:$0xf]
        %v333 = vld [vmem:[#allocation8 + $0x3c] sm:$0xf]
        %v334 = vld [vmem:[%s262] sm:$0xff]
        %v335 = vld [vmem:[%s262 + $0x8] sm:$0xff]
        %v336 = vld [vmem:[%s262 + $0x10] sm:$0xff]
        %v337 = vld [vmem:[%s262 + $0x18] sm:$0xff]
        %v338 = vld [vmem:[%s262 + $0x20] sm:$0xff]
        %v339 = vld [vmem:[%s262 + $0x28] sm:$0xff]
        %v340 = vld [vmem:[%s262 + $0x30] sm:$0xff]
        %v341 = vld [vmem:[%s262 + $0x38] sm:$0xff]
        %v342 = vld [vmem:[%s262 + $0x40] sm:$0xff]
        %v343 = vld [vmem:[%s262 + $0x48] sm:$0xff]
        %v344 = vld [vmem:[%s262 + $0x50] sm:$0xff]
        %v345 = vld [vmem:[%s262 + $0x58] sm:$0xff]
        %v346 = vld [vmem:[%s262 + $0x60] sm:$0xff]
        %v347 = vld [vmem:[%s262 + $0x68] sm:$0xff]
        %v348 = vld [vmem:[%s262 + $0x70] sm:$0xff]
        %v349 = vld [vmem:[%s262 + $0x78] sm:$0xff]
        %v366 = vunpack.c.l.b16 %v302
        %v367 = vunpack.c.l.b16 %v303
        %v368 = vunpack.c.l.b16 %v304
        %v369 = vunpack.c.l.b16 %v305
        %v370 = vunpack.c.l.b16 %v306
        %v371 = vunpack.c.l.b16 %v307
        %v372 = vunpack.c.l.b16 %v308
        %v373 = vunpack.c.l.b16 %v309
        %v374 = vunpack.c.l.b16 %v310
        %v375 = vunpack.c.l.b16 %v311
        %v376 = vunpack.c.l.b16 %v312
        %v377 = vunpack.c.l.b16 %v313
        %v378 = vunpack.c.l.b16 %v314
        %v379 = vunpack.c.l.b16 %v315
        %v380 = vunpack.c.l.b16 %v316
        %v381 = vunpack.c.l.b16 %v317
        %v382 = vpack.c.b16 %v367, %v366
        %v383 = vpack.c.b16 %v369, %v368
        %v384 = vpack.c.b16 %v371, %v370
        %v385 = vpack.c.b16 %v373, %v372
        %v386 = vpack.c.b16 %v375, %v374
        %v387 = vpack.c.b16 %v377, %v376
        %v388 = vpack.c.b16 %v379, %v378
        %v389 = vpack.c.b16 %v381, %v380
        %v414 = vunpack.c.l.b16 %v318
        %v415 = vunpack.c.l.b16 %v319
        %v416 = vunpack.c.l.b16 %v320
        %v417 = vunpack.c.l.b16 %v321
        %v418 = vunpack.c.l.b16 %v322
        %v419 = vunpack.c.l.b16 %v323
        %v420 = vunpack.c.l.b16 %v324
        %v421 = vunpack.c.l.b16 %v325
        %v422 = vunpack.c.l.b16 %v326
        %v423 = vunpack.c.l.b16 %v327
        %v424 = vunpack.c.l.b16 %v328
        %v425 = vunpack.c.l.b16 %v329
        %v426 = vunpack.c.l.b16 %v330
        %v427 = vunpack.c.l.b16 %v331
        %v428 = vunpack.c.l.b16 %v332
        %v429 = vunpack.c.l.b16 %v333
        %v430 = vpack.c.b16 %v415, %v414
        %v431 = vpack.c.b16 %v417, %v416
        %v432 = vpack.c.b16 %v419, %v418
        %v433 = vpack.c.b16 %v421, %v420
        %v434 = vpack.c.b16 %v423, %v422
        %v435 = vpack.c.b16 %v425, %v424
        %v436 = vpack.c.b16 %v427, %v426
        %v437 = vpack.c.b16 %v429, %v428
        %446 = vmatprep.subr.bf16.mxu0 0
        %447 = vmatpush1.bf16.msra.mxu0 %v437
        %448 = vmatprep.subr.bf16.mxu0 0
        %449 = vmatpush1.bf16.msra.mxu0 %v436
        %450 = vmatprep.subr.bf16.mxu0 0
        %451 = vmatpush1.bf16.msra.mxu0 %v435
        %452 = vmatprep.subr.bf16.mxu0 0
        %453 = vmatpush1.bf16.msra.mxu0 %v434
        %454 = vmatprep.subr.bf16.mxu0 0
        %455 = vmatpush1.bf16.msra.mxu0 %v433
        %456 = vmatprep.subr.bf16.mxu0 0
        %457 = vmatpush1.bf16.msra.mxu0 %v432
        %458 = vmatprep.subr.bf16.mxu0 0
        %459 = vmatpush1.bf16.msra.mxu0 %v431
        %460 = vmatprep.subr.bf16.mxu0 0
        %461 = vmatpush1.bf16.msra.mxu0 %v430
        %462 = vmatprep.subr.bf16.mxu0 0
        %463 = vmatpush2.bf16.msra.mxu0 0
        %464 = vmatprep.subr.bf16.mxu0 0
        %465 = vmatpush2.bf16.msra.mxu0 0
        %466 = vmatprep.subr.bf16.mxu0 0
        %467 = vmatpush2.bf16.msra.mxu0 0
        %468 = vmatprep.subr.bf16.mxu0 0
        %469 = vmatpush2.bf16.msra.mxu0 0
        %470 = vmatprep.subr.bf16.mxu0 0
        %471 = vmatpush2.bf16.msra.mxu0 0
        %472 = vmatprep.subr.bf16.mxu0 0
        %473 = vmatpush2.bf16.msra.mxu0 0
        %474 = vmatprep.subr.bf16.mxu0 0
        %475 = vmatpush2.bf16.msra.mxu0 0
        %476 = vmatprep.subr.bf16.mxu0 0
        %477 = vmatpush2.bf16.msra.mxu0 0
        %478 = vmatprep.mubr.bf16.mxu0 0
        %479 = vmatmul.mubr.bf16.gmra.mxu0 %v382
        %v480 = vpop.f32.mrf.mxu0
        %v481 = vadd.f32 %v334, %v480
        %v482 = vpop.f32.mrf.mxu0
        %v483 = vpop.f32.mrf.mxu0
        %v484 = vadd.f32 %v335, %v483
        %v485 = vpop.f32.mrf.mxu0
        %486 = vmatprep.mubr.bf16.mxu0 0
        %487 = vmatmul.mubr.bf16.gmra.mxu0 %v383
        %v488 = vpop.f32.mrf.mxu0
        %v489 = vadd.f32 %v336, %v488
        %v490 = vpop.f32.mrf.mxu0
        %v491 = vpop.f32.mrf.mxu0
        %v492 = vadd.f32 %v337, %v491
        %v493 = vpop.f32.mrf.mxu0
        %494 = vmatprep.mubr.bf16.mxu0 0
        %495 = vmatmul.mubr.bf16.gmra.mxu0 %v384
        %v496 = vpop.f32.mrf.mxu0
        %v497 = vadd.f32 %v338, %v496
        %v498 = vpop.f32.mrf.mxu0
        %v499 = vpop.f32.mrf.mxu0
        %v500 = vadd.f32 %v339, %v499
        %v501 = vpop.f32.mrf.mxu0
        %502 = vmatprep.mubr.bf16.mxu0 0
        %503 = vmatmul.mubr.bf16.gmra.mxu0 %v385
        %v504 = vpop.f32.mrf.mxu0
        %v505 = vadd.f32 %v340, %v504
        %v506 = vpop.f32.mrf.mxu0
        %v507 = vpop.f32.mrf.mxu0
        %v508 = vadd.f32 %v341, %v507
        %v509 = vpop.f32.mrf.mxu0
        %510 = vmatprep.mubr.bf16.mxu0 0
        %511 = vmatmul.mubr.bf16.gmra.mxu0 %v386
        %v512 = vpop.f32.mrf.mxu0
        %v513 = vadd.f32 %v342, %v512
        %v514 = vpop.f32.mrf.mxu0
        %v515 = vpop.f32.mrf.mxu0
        %v516 = vadd.f32 %v343, %v515
        %v517 = vpop.f32.mrf.mxu0
        %518 = vmatprep.mubr.bf16.mxu0 0
        %519 = vmatmul.mubr.bf16.gmra.mxu0 %v387
        %v520 = vpop.f32.mrf.mxu0
        %v521 = vadd.f32 %v344, %v520
        %v522 = vpop.f32.mrf.mxu0
        %v523 = vpop.f32.mrf.mxu0
        %v524 = vadd.f32 %v345, %v523
        %v525 = vpop.f32.mrf.mxu0
        %526 = vmatprep.mubr.bf16.mxu0 0
        %527 = vmatmul.mubr.bf16.gmra.mxu0 %v388
        %v528 = vpop.f32.mrf.mxu0
        %v529 = vadd.f32 %v346, %v528
        %v530 = vpop.f32.mrf.mxu0
        %v531 = vpop.f32.mrf.mxu0
        %v532 = vadd.f32 %v347, %v531
        %v533 = vpop.f32.mrf.mxu0
        %534 = vmatprep.mubr.bf16.mxu0 0
        %535 = vmatmul.mubr.bf16.gmra.mxu0 %v389
        %v536 = vpop.f32.mrf.mxu0
        %v537 = vadd.f32 %v348, %v536
        %v538 = vpop.f32.mrf.mxu0
        %v539 = vpop.f32.mrf.mxu0
        %v540 = vadd.f32 %v349, %v539
        %v541 = vpop.f32.mrf.mxu0
        %542 = vdwg.mxu0
        %v543 = vmax.f32 %v481, 0.0
        %v544 = vmax.f32 %v484, 0.0
        %v545 = vmax.f32 %v489, 0.0
        %v546 = vmax.f32 %v492, 0.0
        %v547 = vmax.f32 %v497, 0.0
        %v548 = vmax.f32 %v500, 0.0
        %v549 = vmax.f32 %v505, 0.0
        %v550 = vmax.f32 %v508, 0.0
        %v551 = vmax.f32 %v513, 0.0
        %v552 = vmax.f32 %v516, 0.0
        %v553 = vmax.f32 %v521, 0.0
        %v554 = vmax.f32 %v524, 0.0
        %v555 = vmax.f32 %v529, 0.0
        %v556 = vmax.f32 %v532, 0.0
        %v557 = vmax.f32 %v537, 0.0
        %v558 = vmax.f32 %v540, 0.0
        %v559 = vld [vmem:[%s3] sm:$0x1]
        %v561 = vlaneseq
        %v562 = vshrl.u32 %v561, 7
        %v563 = vsub.s32 0, %v562
        %v564 = vrot.slane %v559, %v563
        %v566 = vmul.f32 %v543, %v564
        %v567 = vmul.f32 %v544, %v564
        %v568 = vmul.f32 %v545, %v564
        %v569 = vmul.f32 %v546, %v564
        %v570 = vmul.f32 %v547, %v564
        %v571 = vmul.f32 %v548, %v564
        %v572 = vmul.f32 %v549, %v564
        %v573 = vmul.f32 %v550, %v564
        %v574 = vmul.f32 %v551, %v564
        %v575 = vmul.f32 %v552, %v564
        %v576 = vmul.f32 %v553, %v564
        %v577 = vmul.f32 %v554, %v564
        %v578 = vmul.f32 %v555, %v564
        %v579 = vmul.f32 %v556, %v564
        %v580 = vmul.f32 %v557, %v564
        %v581 = vmul.f32 %v558, %v564
        %582 = vadd.xlane.f32.xlu0 %v566
        %v583 = vpop.xlane.xlu0 %582
        %584 = vadd.xlane.f32.xlu0 %v567
        %v585 = vpop.xlane.xlu0 %584
        %586 = vadd.xlane.f32.xlu0 %v568
        %v587 = vpop.xlane.xlu0 %586
        %588 = vadd.xlane.f32.xlu0 %v569
        %v589 = vpop.xlane.xlu0 %588
        %590 = vadd.xlane.f32.xlu0 %v570
        %v591 = vpop.xlane.xlu0 %590
        %592 = vadd.xlane.f32.xlu0 %v571
        %v593 = vpop.xlane.xlu0 %592
        %594 = vadd.xlane.f32.xlu0 %v572
        %v595 = vpop.xlane.xlu0 %594
        %596 = vadd.xlane.f32.xlu0 %v573
        %v597 = vpop.xlane.xlu0 %596
        %598 = vadd.xlane.f32.xlu0 %v574
        %v599 = vpop.xlane.xlu0 %598
        %600 = vadd.xlane.f32.xlu0 %v575
        %v601 = vpop.xlane.xlu0 %600
        %602 = vadd.xlane.f32.xlu0 %v576
        %v603 = vpop.xlane.xlu0 %602
        %604 = vadd.xlane.f32.xlu0 %v577
        %v605 = vpop.xlane.xlu0 %604
        %606 = vadd.xlane.f32.xlu0 %v578
        %v607 = vpop.xlane.xlu0 %606
        %608 = vadd.xlane.f32.xlu0 %v579
        %v609 = vpop.xlane.xlu0 %608
        %610 = vadd.xlane.f32.xlu0 %v580
        %v611 = vpop.xlane.xlu0 %610
        %612 = vadd.xlane.f32.xlu0 %v581
        %v613 = vpop.xlane.xlu0 %612
        %s614 = sld [smem:[#allocation2]]
        %v615 = vstv %s614
        %v616 = vadd.f32 %v583, %v615
        %v617 = vadd.f32 %v585, %v615
        %v618 = vadd.f32 %v587, %v615
        %v619 = vadd.f32 %v589, %v615
        %v620 = vadd.f32 %v591, %v615
        %v621 = vadd.f32 %v593, %v615
        %v622 = vadd.f32 %v595, %v615
        %v623 = vadd.f32 %v597, %v615
        %v624 = vadd.f32 %v599, %v615
        %v625 = vadd.f32 %v601, %v615
        %v626 = vadd.f32 %v603, %v615
        %v627 = vadd.f32 %v605, %v615
        %v628 = vadd.f32 %v607, %v615
        %v629 = vadd.f32 %v609, %v615
        %v630 = vadd.f32 %v611, %v615
        %v631 = vadd.f32 %v613, %v615
        %v632 = vand.u32 2147483647, %v616
        %v633 = vand.u32 2147483647, %v617
        %v634 = vand.u32 2147483647, %v618
        %v635 = vand.u32 2147483647, %v619
        %v636 = vand.u32 2147483647, %v620
        %v637 = vand.u32 2147483647, %v621
        %v638 = vand.u32 2147483647, %v622
        %v639 = vand.u32 2147483647, %v623
        %v640 = vand.u32 2147483647, %v624
        %v641 = vand.u32 2147483647, %v625
        %v642 = vand.u32 2147483647, %v626
        %v643 = vand.u32 2147483647, %v627
        %v644 = vand.u32 2147483647, %v628
        %v645 = vand.u32 2147483647, %v629
        %v646 = vand.u32 2147483647, %v630
        %v647 = vand.u32 2147483647, %v631
        %v648 = vsub.f32 0.0, %v632
        %v649 = vsub.f32 0.0, %v633
        %v650 = vsub.f32 0.0, %v634
        %v651 = vsub.f32 0.0, %v635
        %v652 = vsub.f32 0.0, %v636
        %v653 = vsub.f32 0.0, %v637
        %v654 = vsub.f32 0.0, %v638
        %v655 = vsub.f32 0.0, %v639
        %v656 = vsub.f32 0.0, %v640
        %v657 = vsub.f32 0.0, %v641
        %v658 = vsub.f32 0.0, %v642
        %v659 = vsub.f32 0.0, %v643
        %v660 = vsub.f32 0.0, %v644
        %v661 = vsub.f32 0.0, %v645
        %v662 = vsub.f32 0.0, %v646
        %v663 = vsub.f32 0.0, %v647
        %v664 = vmul.f32 %v648, 1.442695
        %v665 = vpow.pop %v664
        %v666 = vmul.f32 %v649, 1.442695
        %v667 = vpow.pop %v666
        %v668 = vmul.f32 %v650, 1.442695
        %v669 = vpow.pop %v668
        %v670 = vmul.f32 %v651, 1.442695
        %v671 = vpow.pop %v670
        %v672 = vmul.f32 %v652, 1.442695
        %v673 = vpow.pop %v672
        %v674 = vmul.f32 %v653, 1.442695
        %v675 = vpow.pop %v674
        %v676 = vmul.f32 %v654, 1.442695
        %v677 = vpow.pop %v676
        %v678 = vmul.f32 %v655, 1.442695
        %v679 = vpow.pop %v678
        %v680 = vmul.f32 %v656, 1.442695
        %v681 = vpow.pop %v680
        %v682 = vmul.f32 %v657, 1.442695
        %v683 = vpow.pop %v682
        %v684 = vmul.f32 %v658, 1.442695
        %v685 = vpow.pop %v684
        %v686 = vmul.f32 %v659, 1.442695
        %v687 = vpow.pop %v686
        %v688 = vmul.f32 %v660, 1.442695
        %v689 = vpow.pop %v688
        %v690 = vmul.f32 %v661, 1.442695
        %v691 = vpow.pop %v690
        %v692 = vmul.f32 %v662, 1.442695
        %v693 = vpow.pop %v692
        %v694 = vmul.f32 %v663, 1.442695
        %v695 = vpow.pop %v694
        %vm696 = vcmp.ge.f32.partialorder %v616, 0.0
        %vm697 = vcmp.ge.f32.partialorder %v617, 0.0
        %vm698 = vcmp.ge.f32.partialorder %v618, 0.0
        %vm699 = vcmp.ge.f32.partialorder %v619, 0.0
        %vm700 = vcmp.ge.f32.partialorder %v620, 0.0
        %vm701 = vcmp.ge.f32.partialorder %v621, 0.0
        %vm702 = vcmp.ge.f32.partialorder %v622, 0.0
        %vm703 = vcmp.ge.f32.partialorder %v623, 0.0
        %vm704 = vcmp.ge.f32.partialorder %v624, 0.0
        %vm705 = vcmp.ge.f32.partialorder %v625, 0.0
        %vm706 = vcmp.ge.f32.partialorder %v626, 0.0
        %vm707 = vcmp.ge.f32.partialorder %v627, 0.0
        %vm708 = vcmp.ge.f32.partialorder %v628, 0.0
        %vm709 = vcmp.ge.f32.partialorder %v629, 0.0
        %vm710 = vcmp.ge.f32.partialorder %v630, 0.0
        %vm711 = vcmp.ge.f32.partialorder %v631, 0.0
        %v712 = vsel %vm696, 1.0, %v665
        %v713 = vsel %vm697, 1.0, %v667
        %v714 = vsel %vm698, 1.0, %v669
        %v715 = vsel %vm699, 1.0, %v671
        %v716 = vsel %vm700, 1.0, %v673
        %v717 = vsel %vm701, 1.0, %v675
        %v718 = vsel %vm702, 1.0, %v677
        %v719 = vsel %vm703, 1.0, %v679
        %v720 = vsel %vm704, 1.0, %v681
        %v721 = vsel %vm705, 1.0, %v683
        %v722 = vsel %vm706, 1.0, %v685
        %v723 = vsel %vm707, 1.0, %v687
        %v724 = vsel %vm708, 1.0, %v689
        %v725 = vsel %vm709, 1.0, %v691
        %v726 = vsel %vm710, 1.0, %v693
        %v727 = vsel %vm711, 1.0, %v695
        %v728 = vadd.f32 %v665, 1.0
        %v729 = vadd.f32 %v667, 1.0
        %v730 = vadd.f32 %v669, 1.0
        %v731 = vadd.f32 %v671, 1.0
        %v732 = vadd.f32 %v673, 1.0
        %v733 = vadd.f32 %v675, 1.0
        %v734 = vadd.f32 %v677, 1.0
        %v735 = vadd.f32 %v679, 1.0
        %v736 = vadd.f32 %v681, 1.0
        %v737 = vadd.f32 %v683, 1.0
        %v738 = vadd.f32 %v685, 1.0
        %v739 = vadd.f32 %v687, 1.0
        %v740 = vadd.f32 %v689, 1.0
        %v741 = vadd.f32 %v691, 1.0
        %v742 = vadd.f32 %v693, 1.0
        %v743 = vadd.f32 %v695, 1.0
        %v744 = vrcp.pop %v728
        %v745 = vrcp.pop %v729
        %v746 = vrcp.pop %v730
        %v747 = vrcp.pop %v731
        %v748 = vrcp.pop %v732
        %v749 = vrcp.pop %v733
        %v750 = vrcp.pop %v734
        %v751 = vrcp.pop %v735
        %v752 = vrcp.pop %v736
        %v753 = vrcp.pop %v737
        %v754 = vrcp.pop %v738
        %v755 = vrcp.pop %v739
        %v756 = vrcp.pop %v740
        %v757 = vrcp.pop %v741
        %v758 = vrcp.pop %v742
        %v759 = vrcp.pop %v743
        %v760 = vmul.f32 %v712, %v744
        %v761 = vmul.f32 %v713, %v745
        %v762 = vmul.f32 %v714, %v746
        %v763 = vmul.f32 %v715, %v747
        %v764 = vmul.f32 %v716, %v748
        %v765 = vmul.f32 %v717, %v749
        %v766 = vmul.f32 %v718, %v750
        %v767 = vmul.f32 %v719, %v751
        %v768 = vmul.f32 %v720, %v752
        %v769 = vmul.f32 %v721, %v753
        %v770 = vmul.f32 %v722, %v754
        %v771 = vmul.f32 %v723, %v755
        %v772 = vmul.f32 %v724, %v756
        %v773 = vmul.f32 %v725, %v757
        %v774 = vmul.f32 %v726, %v758
        %v775 = vmul.f32 %v727, %v759
        %776 = vst [vmem:[%s297] sm:$0xff] %v760
        %777 = vst [vmem:[%s297 + $0x8] sm:$0xff] %v761
        %778 = vst [vmem:[%s297 + $0x10] sm:$0xff] %v762
        %779 = vst [vmem:[%s297 + $0x18] sm:$0xff] %v763
        %780 = vst [vmem:[%s297 + $0x20] sm:$0xff] %v764
        %781 = vst [vmem:[%s297 + $0x28] sm:$0xff] %v765
        %782 = vst [vmem:[%s297 + $0x30] sm:$0xff] %v766
        %783 = vst [vmem:[%s297 + $0x38] sm:$0xff] %v767
        %784 = vst [vmem:[%s297 + $0x40] sm:$0xff] %v768
        %785 = vst [vmem:[%s297 + $0x48] sm:$0xff] %v769
        %786 = vst [vmem:[%s297 + $0x50] sm:$0xff] %v770
        %787 = vst [vmem:[%s297 + $0x58] sm:$0xff] %v771
        %788 = vst [vmem:[%s297 + $0x60] sm:$0xff] %v772
        %789 = vst [vmem:[%s297 + $0x68] sm:$0xff] %v773
        %790 = vst [vmem:[%s297 + $0x70] sm:$0xff] %v774
        %791 = vst [vmem:[%s297 + $0x78] sm:$0xff] %v775
        %s792 = sand.u32 %s149, 1
        %s793 = scalar_lea.sflag [#allocation5], %s792
        %s794 = sand.u32 %s149, 1
        %s795 = smul.addr %s794, 128
        %s796 = scalar_lea.vmem [#allocation9], %s795
        // Predicated region
        $region53: #{tpu_custom_call.1} parent=39 // pred_check
          %p797 = pneg %p159
        $region54: #{tpu_custom_call.1} parent=39 // pred_check_branch
          %799 = sbr.rel (%p797) target = $region56
        $region55: #{tpu_custom_call.1} parent=39 // pred_region
          %s800 = smul.u32 16, %s26
          %s802 = ssub.s32 2048, 2048
          %803 = vsyncadd %s793, %s802
          %s804 = smul.addr %s800, 128
          %s805 = scalar_lea.hbm %s5, %s804
          %s806 = sshll.u32 %s796, 4
          %s807 = int_to_ptr.vmem [resolvable:$true] %s806
          %812 = dma.vmem_to_hbm [thread:$0]  %s807, 2048, %s805, %s793, 128, 128, 8
        $region56: #{tpu_custom_call.1} parent=39 // pred_fallthru
          _
      $region40: #{tpu_custom_call.1} parent=5 // pred_fallthru
        _
      %p813 = scmp.le.s32.totalorder 2, %s21
      // Predicated region
      $region57: #{tpu_custom_call.1} parent=5 // pred_check
        %p814 = pneg %p813
      $region58: #{tpu_custom_call.1} parent=5 // pred_check_branch
        %816 = sbr.rel (%p814) target = $region60
      $region59: #{tpu_custom_call.1} parent=5 // pred_region
        %s817 = ssub.s32 %s21, 2
        // Predicated region
        $region61: #{tpu_custom_call.1} parent=59 // pred_check
          %p818 = pneg %p165
        $region62: #{tpu_custom_call.1} parent=59 // pred_check_branch
          %820 = sbr.rel (%p818) target = $region64
        $region63: #{tpu_custom_call.1} parent=59 // pred_region
          %s821 = sand.u32 %s150, 1
          %s822 = scalar_lea.sflag [#allocation5], %s821
          %s823 = sand.u32 %s150, 1
          %s824 = smul.addr %s823, 128
          %s825 = scalar_lea.vmem [#allocation9], %s824
          %826 = dma.done %s822, 2048
        $region64: #{tpu_custom_call.1} parent=59 // pred_fallthru
          _
      $region60: #{tpu_custom_call.1} parent=5 // pred_fallthru
        _
    $region6: #{tpu_custom_call.1} parent=1 // loop_footer
      %s25 = sadd.s32 1, %s21
    $region7: #{tpu_custom_call.1} parent=1 // loop_footer_branch
      %20 = sbr.rel target = $region3
    $region8: #{tpu_custom_call.1} parent=1 // loop_exit
      _
    %827 = vsyncpa [#allocation4], 1
    %s828 = scalar_lea.sflag [#allocation4], 1
    %829 = vsyncpa %s828, 1
    %830 = vsyncpa [#allocation7], 1
    %s831 = scalar_lea.sflag [#allocation7], 1
    %832 = vsyncpa %s831, 1
    %833 = vsyncpa [#allocation5], 1
    %s834 = scalar_lea.sflag [#allocation5], 1
    %835 = vsyncpa %s834, 1

</llo_original>
